<compile_context>
chip_gen: v7x
topology: tpu7x:2x2x1
jax: 0.10.0
libtpu: 0.0.40
codegen_flags: <defaults>
</compile_context>

<pallas_src>
import functools

import jax
import jax.numpy as jnp
from jax.experimental import pallas as pl
from jax.experimental.pallas import tpu as pltpu
from jax.scipy.special import xlogy

HP = 128  # hidden dim padded to one full lane width


def _decoder_kernel(x_ref, wlr_ref, blr_ref, w3_ref, b3_ref, adj_ref, sp_ref,
                    *, blk, n, hp):
    # x_ref:   (blk*N, D)      bf16
    # wlr_ref: (D, 2*Hp)       bf16   (fc_l || fc_r, zero-padded hidden)
    # blr_ref: (1, 2*Hp)       f32
    # w3_ref:  (1, Hp)         f32
    # b3_ref:  (1,)            f32    (SMEM scalar)
    # adj_ref: (1, 1, blk*N*N) f32    (lane-dense sigmoid logits)
    # sp_ref:  (1, 1, 1)       f32    (partial sum of |adj_prob| for sparse loss)
    L = blk * n * n

    # Fused fc_l / fc_r: one bf16 MXU matmul, f32 accumulation.
    dot_lr = jnp.dot(x_ref[...], wlr_ref[...],
                     preferred_element_type=jnp.float32) + blr_ref[...]   # (blk*N, 2Hp)
    dot_l = dot_lr[:, :hp].reshape(blk, n, hp)                            # (blk, N, Hp)
    dot_r = dot_lr[:, hp:].reshape(blk, n, hp)                            # (blk, N, Hp)

    # Pairwise tiled add + relu, kept f32 (v5e VPU has no bf16 path).
    # TODO(synk): for large N, tile the (blk, N, N, Hp) slab over an i-axis grid
    # dimension so it fits v7x's 64 MiB VMEM.
    pair = dot_l[:, :, None, :] + dot_r[:, None, :, :]                    # (blk, N, N, Hp)
    final = jnp.maximum(pair, 0.0).reshape(L, hp)                         # tile-aligned

    # fc_3 on the MXU; output is a lane-dense (1, blk*N*N) row.
    logit = jnp.dot(w3_ref[...], final.T,
                    preferred_element_type=jnp.float32) + b3_ref[0]       # (1, L)
    probs = jax.nn.sigmoid(logit)                                         # (1, L)

    adj_ref[...] = probs.reshape(1, 1, L)
    sp_ref[...] = jnp.sum(jnp.abs(probs)).reshape(1, 1, 1)


def decoder_adj_prob(x, prepared, *, hp=HP):
    """adj_prob = sigmoid(fc_3(relu(tiled_l + tiled_r))), plus sum(|adj_prob|)."""
    w_lr, b_lr, w3_row, b3 = prepared
    B, N, D = x.shape

    # Two grid steps (one per v7x TensorCore) only when each block's flat logit
    # row is still a multiple of 128 lanes; otherwise a single fused step.
    num_blocks = 2 if (B % 2 == 0 and ((B // 2) * N * N) % 128 == 0) else 1
    blk = B // num_blocks
    L = blk * N * N

    x2d = x.reshape(B * N, D).astype(jnp.bfloat16)   # one matmul for all batches
    kernel = functools.partial(_decoder_kernel, blk=blk, n=N, hp=hp)

    adj_flat, sp_part = pl.pallas_call(
        kernel,
        out_shape=[
            jax.ShapeDtypeStruct((num_blocks, 1, L), jnp.float32),
            jax.ShapeDtypeStruct((num_blocks, 1, 1), jnp.float32),
        ],
        grid=(num_blocks,),
        in_specs=[
            pl.BlockSpec((blk * N, D), lambda g: (g, 0)),        # x (bf16)
            pl.BlockSpec((D, 2 * hp), lambda g: (0, 0)),         # fused W_l||W_r (bf16)
            pl.BlockSpec((1, 2 * hp), lambda g: (0, 0)),         # fused b_l||b_r (f32)
            pl.BlockSpec((1, hp), lambda g: (0, 0)),             # w3 row (f32)
            pl.BlockSpec(memory_space=pltpu.MemorySpace.SMEM),   # b3 scalar
        ],
        out_specs=[
            pl.BlockSpec((1, 1, L), lambda g: (g, 0, 0)),        # lane-dense logits
            pl.BlockSpec((1, 1, 1), lambda g: (g, 0, 0)),        # |adj| partial sum
        ],
        compiler_params=pltpu.CompilerParams(dimension_semantics=("parallel",)),
    )(x2d, w_lr, b_lr, w3_row, b3)

    adj_prob = adj_flat.reshape(B, N, N)     # metadata-only reshape outside the kernel
    abs_sum = jnp.sum(sp_part)
    return adj_prob, abs_sum


def prepare_params(params, hp=HP):
    """Pad hidden dim to 128 lanes, fuse fc_l/fc_r, cast matmul weights to bf16."""
    wl, bl, wr, br, w3, b3 = params          # wl/wr: (D,H), bl/br/w3: (H,), b3: ()
    D, H = wl.shape
    assert H <= hp
    padw = ((0, 0), (0, hp - H))
    w_lr = jnp.concatenate([jnp.pad(wl, padw), jnp.pad(wr, padw)],
                           axis=1).astype(jnp.bfloat16)                    # (D, 2*hp)
    b_lr = jnp.concatenate([jnp.pad(bl, (0, hp - H)),
                            jnp.pad(br, (0, hp - H))])[None, :].astype(jnp.float32)
    w3_row = jnp.pad(w3, (0, hp - H))[None, :].astype(jnp.float32)         # (1, hp)
    b3_s = jnp.asarray(b3, jnp.float32).reshape(1)                          # (1,)
    return w_lr, b_lr, w3_row, b3_s


def single_layer_decoder_forward(x, prepared, key, sparse_loss_flag=True):
    """Reproduces SingleLayerDecoder.forward (samples/mask_scores/entropy lists)."""
    adj_prob, abs_sum = decoder_adj_prob(x, prepared)                      # [B,N,N]
    B, N, _ = adj_prob.shape

    # Vectorized diagonal mask / Bernoulli sample / entropy (was an N-step loop).
    mask = 1.0 - jnp.eye(N, dtype=adj_prob.dtype)                          # [N,N]
    masked_scores = adj_prob * mask[None, :, :]                            # [B,N,N]
    samples = jax.random.bernoulli(key, masked_scores).astype(jnp.float32)
    p = masked_scores
    entropy = -(xlogy(p, p) + xlogy(1.0 - p, 1.0 - p))                     # Bernoulli entropy

    samples_list = [samples[:, i, :] for i in range(N)]
    scores_list = [masked_scores[:, i, :] for i in range(N)]
    entropy_list = [entropy[:, i, :] for i in range(N)]

    if sparse_loss_flag:
        sparse_loss = 0.01 * abs_sum
        return samples_list, scores_list, entropy_list, adj_prob, sparse_loss
    return samples_list, scores_list, entropy_list, adj_prob, adj_prob


def init_params(key, n_xdims, decoder_hidden_dim):
    """Xavier-normal weights, zero biases (matches init_weights); torch (out,in)
    weights are stored transposed as (in,out) for x @ W."""
    D, H = n_xdims, decoder_hidden_dim
    k1, k2, k3 = jax.random.split(key, 3)
    wl = jax.random.normal(k1, (D, H), jnp.float32) * jnp.sqrt(2.0 / (D + H))
    wr = jax.random.normal(k2, (D, H), jnp.float32) * jnp.sqrt(2.0 / (D + H))
    w3 = jax.random.normal(k3, (H,), jnp.float32) * jnp.sqrt(2.0 / (H + 1))
    bl = jnp.zeros((H,), jnp.float32)
    br = jnp.zeros((H,), jnp.float32)
    b3 = jnp.zeros((), jnp.float32)
    return wl, bl, wr, br, w3, b3


def _reference_adj_prob(x, params):
    """Pure-JAX f32 reference of the PyTorch forward (for a loose self-check)."""
    wl, bl, wr, br, w3, b3 = params
    dot_l = x @ wl + bl
    dot_r = x @ wr + br
    final = jnp.maximum(dot_l[:, :, None, :] + dot_r[:, None, :, :], 0.0)
    return jax.nn.sigmoid(jnp.einsum('bijh,h->bij', final, w3) + b3)


if __name__ == "__main__":
    # Shapes implied by the forward: input [B, node_num, n_xdims].
    B, N, D, H = 2, 8, 16, 32   # batch, node_num, n_xdims, decoder_hidden_dim

    key = jax.random.PRNGKey(0)
    k_param, k_input, k_sample = jax.random.split(key, 3)

    params = init_params(k_param, D, H)
    prepared = prepare_params(params)
    x = jax.random.normal(k_input, (B, N, D), jnp.float32)

    samples, mask_scores, entropy, adj_prob, sparse_loss = (
        single_layer_decoder_forward(x, prepared, k_sample, sparse_loss_flag=True))

    jax.block_until_ready(adj_prob)
    jax.block_until_ready(sparse_loss)
    jax.block_until_ready(samples)
    jax.block_until_ready(mask_scores)
    jax.block_until_ready(entropy)

    assert adj_prob.shape == (B, N, N)
    assert len(samples) == N and samples[0].shape == (B, N)
    assert len(mask_scores) == N and mask_scores[0].shape == (B, N)
    assert len(entropy) == N and entropy[0].shape == (B, N)

    # Loose parity check vs. f32 reference (kernel uses bf16 MXU inputs).
    ref = _reference_adj_prob(x, params)
    assert jnp.max(jnp.abs(adj_prob - ref)) < 2e-2
    assert jnp.abs(sparse_loss - 0.01 * jnp.sum(jnp.abs(ref))) < 0.02 * (
        0.01 * jnp.sum(jnp.abs(ref)) + 1.0)

    print("KERNEL_OK")
</pallas_src>

<mosaic_0001>
module attributes {stable_mosaic.version = 11 : i64} {
  func.func @_decoder_kernel(%arg0: i32, %arg1: memref<16x16xbf16, #tpu.memory_space<vmem>>, %arg2: memref<16x256xbf16, #tpu.memory_space<vmem>>, %arg3: memref<1x256xf32, #tpu.memory_space<vmem>>, %arg4: memref<1x128xf32, #tpu.memory_space<vmem>>, %arg5: memref<1xf32, #tpu.memory_space<smem>>, %arg6: memref<1x1x128xf32, #tpu.memory_space<vmem>>, %arg7: memref<1x1x1xf32, #tpu.memory_space<vmem>>) attributes {dimension_semantics = [#tpu.dimension_semantics<parallel>], iteration_bounds = array<i64: 1>, scalar_prefetch = 0 : i64, scratch_operands = 0 : i64, tpu.core_type = #tpu.core_type<tc>, window_params = [{transform_indices = @transform_0, window_bounds = array<i64: 16, 16>}, {pipeline_mode = #tpu.pipeline_mode<synchronous>, transform_indices = @transform_1, window_bounds = array<i64: 16, 256>}, {pipeline_mode = #tpu.pipeline_mode<synchronous>, transform_indices = @transform_2, window_bounds = array<i64: 1, 256>}, {pipeline_mode = #tpu.pipeline_mode<synchronous>, transform_indices = @transform_3, window_bounds = array<i64: 1, 128>}, {transform_indices = @transform_4, window_bounds = array<i64: 1>}, {transform_indices = @transform_5, window_bounds = array<i64: 1, 1, 128>}, {transform_indices = @transform_6, window_bounds = array<i64: 1, 1, 1>}]} {
    %c0 = arith.constant 0 : index
    %c0_0 = arith.constant 0 : index
    %0 = vector.load %arg1[%c0, %c0_0] : memref<16x16xbf16, #tpu.memory_space<vmem>>, vector<16x16xbf16>
    %c0_1 = arith.constant 0 : index
    %c0_2 = arith.constant 0 : index
    %1 = vector.load %arg2[%c0_1, %c0_2] : memref<16x256xbf16, #tpu.memory_space<vmem>>, vector<16x256xbf16>
    %cst = arith.constant dense<0.000000e+00> : vector<16x256xf32>
    %2 = tpu.matmul %0, %1, %cst {dimension_numbers = #tpu.dot_dimension_numbers<[1], [0], [0], [1], [0, 0, 1, 1], [], []>} : vector<16x16xbf16>, vector<16x256xbf16>, vector<16x256xf32> -> vector<16x256xf32>
    %c0_3 = arith.constant 0 : index
    %c0_4 = arith.constant 0 : index
    %3 = vector.load %arg3[%c0_3, %c0_4] : memref<1x256xf32, #tpu.memory_space<vmem>>, vector<1x256xf32>
    %4 = vector.broadcast %3 : vector<1x256xf32> to vector<16x256xf32>
    %5 = arith.addf %2, %4 : vector<16x256xf32>
    %6 = vector.extract_strided_slice %5 {offsets = [0, 0], sizes = [16, 128], strides = [1, 1]} : vector<16x256xf32> to vector<16x128xf32>
    %7 = vector.shape_cast %6 : vector<16x128xf32> to vector<2x8x128xf32>
    %8 = vector.extract_strided_slice %5 {offsets = [0, 128], sizes = [16, 128], strides = [1, 1]} : vector<16x256xf32> to vector<16x128xf32>
    %9 = vector.shape_cast %8 : vector<16x128xf32> to vector<2x8x128xf32>
    %10 = vector.shape_cast %7 : vector<2x8x128xf32> to vector<2x8x1x128xf32>
    %11 = vector.shape_cast %9 : vector<2x8x128xf32> to vector<2x1x8x128xf32>
    %12 = vector.broadcast %10 : vector<2x8x1x128xf32> to vector<2x8x8x128xf32>
    %13 = vector.broadcast %11 : vector<2x1x8x128xf32> to vector<2x8x8x128xf32>
    %14 = arith.addf %12, %13 : vector<2x8x8x128xf32>
    %cst_5 = arith.constant 0.000000e+00 : f32
    %15 = vector.broadcast %cst_5 : f32 to vector<2x8x8x128xf32>
    %16 = arith.maximumf %14, %15 : vector<2x8x8x128xf32>
    %17 = vector.shape_cast %16 : vector<2x8x8x128xf32> to vector<128x128xf32>
    %c0_6 = arith.constant 0 : index
    %c0_7 = arith.constant 0 : index
    %18 = vector.load %arg4[%c0_6, %c0_7] : memref<1x128xf32, #tpu.memory_space<vmem>>, vector<1x128xf32>
    %19 = tpu.transpose %17, [1, 0] : vector<128x128xf32> -> vector<128x128xf32>
    %cst_8 = arith.constant dense<0.000000e+00> : vector<1x128xf32>
    %20 = tpu.matmul %18, %19, %cst_8 {dimension_numbers = #tpu.dot_dimension_numbers<[1], [0], [0], [1], [0, 0, 1, 1], [], []>} : vector<1x128xf32>, vector<128x128xf32>, vector<1x128xf32> -> vector<1x128xf32>
    %c0_9 = arith.constant 0 : index
    %21 = memref.load %arg5[%c0_9] : memref<1xf32, #tpu.memory_space<smem>>
    %22 = vector.broadcast %21 : f32 to vector<1x128xf32>
    %23 = arith.addf %20, %22 : vector<1x128xf32>
    %24 = arith.negf %23 : vector<1x128xf32>
    %25 = math.exp %24 : vector<1x128xf32>
    %cst_10 = arith.constant 1.000000e+00 : f32
    %26 = vector.broadcast %cst_10 : f32 to vector<1x128xf32>
    %27 = arith.addf %26, %25 : vector<1x128xf32>
    %28 = arith.divf %26, %27 : vector<1x128xf32>
    %29 = vector.shape_cast %28 : vector<1x128xf32> to vector<1x1x128xf32>
    %c0_11 = arith.constant 0 : index
    %c0_12 = arith.constant 0 : index
    %c0_13 = arith.constant 0 : index
    %30 = vector.load %arg6[%c0_11, %c0_12, %c0_13] : memref<1x1x128xf32, #tpu.memory_space<vmem>>, vector<1x1x128xf32>
    tpu.vector_store %arg6[%c0_11, %c0_12, %c0_13], %29 {strides = array<i32>} : memref<1x1x128xf32, #tpu.memory_space<vmem>>, vector<1x1x128xf32>,
    %31 = math.absf %28 : vector<1x128xf32>
    %32 = vector.shape_cast %31 : vector<1x128xf32> to vector<1x1x128xf32>
    %cst_14 = arith.constant dense<0.000000e+00> : vector<1xf32>
    %33 = vector.multi_reduction <add>, %32, %cst_14 [1, 2] : vector<1x1x128xf32> to vector<1xf32>
    %34 = vector.shape_cast %33 : vector<1xf32> to vector<1x1x1xf32>
    %35 = vector.extract %34[0, 0, 0] : f32 from vector<1x1x1xf32>
    %36 = vector.broadcast %35 : f32 to vector<1x1x1xf32>
    %c0_15 = arith.constant 0 : index
    %c0_16 = arith.constant 0 : index
    %c0_17 = arith.constant 0 : index
    %37 = vector.load %arg7[%c0_15, %c0_16, %c0_17] : memref<1x1x1xf32, #tpu.memory_space<vmem>>, vector<1x1x1xf32>
    tpu.vector_store %arg7[%c0_15, %c0_16, %c0_17], %36 {strides = array<i32>} : memref<1x1x1xf32, #tpu.memory_space<vmem>>, vector<1x1x1xf32>,
    return
  }
  func.func @transform_0(%arg0: i32) -> (i32, i32) {
    %c0_i32 = arith.constant 0 : i32
    %c0_i32_0 = arith.constant 0 : i32
    return %arg0, %c0_i32 : i32, i32
  }
  func.func @transform_1(%arg0: i32) -> (i32, i32) {
    %c0_i32 = arith.constant 0 : i32
    %c0_i32_0 = arith.constant 0 : i32
    %c0_i32_1 = arith.constant 0 : i32
    return %c0_i32, %c0_i32_0 : i32, i32
  }
  func.func @transform_2(%arg0: i32) -> (i32, i32) {
    %c0_i32 = arith.constant 0 : i32
    %c0_i32_0 = arith.constant 0 : i32
    %c0_i32_1 = arith.constant 0 : i32
    return %c0_i32, %c0_i32_0 : i32, i32
  }
  func.func @transform_3(%arg0: i32) -> (i32, i32) {
    %c0_i32 = arith.constant 0 : i32
    %c0_i32_0 = arith.constant 0 : i32
    %c0_i32_1 = arith.constant 0 : i32
    return %c0_i32, %c0_i32_0 : i32, i32
  }
  func.func @transform_4(%arg0: i32) -> i32 {
    %c0_i32 = arith.constant 0 : i32
    %c0_i32_0 = arith.constant 0 : i32
    return %c0_i32 : i32
  }
  func.func @transform_5(%arg0: i32) -> (i32, i32, i32) {
    %c0_i32 = arith.constant 0 : i32
    %c0_i32_0 = arith.constant 0 : i32
    %c0_i32_1 = arith.constant 0 : i32
    return %arg0, %c0_i32, %c0_i32_0 : i32, i32, i32
  }
  func.func @transform_6(%arg0: i32) -> (i32, i32, i32) {
    %c0_i32 = arith.constant 0 : i32
    %c0_i32_0 = arith.constant 0 : i32
    %c0_i32_1 = arith.constant 0 : i32
    return %arg0, %c0_i32, %c0_i32_0 : i32, i32, i32
  }
}

</mosaic_0001>

<llo_original>
// kernel: tpu_custom_call.1
$region0: #{tpu_custom_call.1}
  #allocation0 [shape = 'u32[]', space=smem, size = 0x4, offset = 0x4, fixed_abs, tag = 'smem constant byte address 0x4 - core index']
  #allocation1 [shape = 'u32[144,128]{1,0:T(1,128)}', space=vmem, size = 0x12000, scoped, tag = 'internal scratch']
  #allocation2 [shape = 'f32[1]{0:T(128)S(6)}', space=smem, size = 0x200, scoped, tag = 'scoped memory for tpu_custom_call.1']
  %s0 = inlined_call_operand.hbm [shape: bf16[16,16], index: 0, kind: input, shape index: {}]
  %s1 = inlined_call_operand.hbm [shape: bf16[16,256], index: 1, kind: input, shape index: {}]
  %s2 = inlined_call_operand.vmem [shape: f32[1,256], index: 2, kind: input, shape index: {}]
  %s3 = inlined_call_operand.vmem [shape: f32[1,128], index: 3, kind: input, shape index: {}]
  %s4 = inlined_call_operand.<no memory space> [shape: f32[1], index: 4, kind: input, shape index: {}]
  %s5 = inlined_call_operand.hbm [shape: f32[1,1,128], index: 5, kind: output, shape index: {0}]
  %s6 = inlined_call_operand.hbm [shape: f32[1,1,1], index: 6, kind: output, shape index: {1}]
  %7 = xla_tuple %s5, %s6
  %s8 = sld [smem:[#allocation0]]
  $region46: #{tpu_custom_call.1} parent=0
    _
  %s10 = ssub.s32 1, %s8
  %s11 = scalar_select 0, %s10, %s8
  %12 = sst [smem:[#allocation2]] %s4
  $region1: #{tpu_custom_call.1} parent=0
    #allocation3 [shape = 'u8[4096]{0}', space=vmem, size = 0x1000, scoped, tag = 'input window, operand 0, single buffered']
    #allocation4 [shape = 's32[1]{0}', space=sflag, size = 0x4, scoped, tag = 'scoped memory for tpu_custom_call.1']
    #allocation5 [shape = 's32[1]{0}', space=sflag, size = 0x4, scoped, tag = 'scoped memory for tpu_custom_call.1']
    #allocation6 [shape = 'u8[8192]{0}', space=vmem, size = 0x2000, scoped, tag = 'input window, operand 1, single buffered']
    #allocation7 [shape = 's32[1]{0}', space=sflag, size = 0x4, scoped, tag = 'scoped memory for tpu_custom_call.1']
    #allocation8 [shape = 'u8[512]{0}', space=vmem, size = 0x400, scoped, tag = 'output window, operand 0, single buffered']
    #allocation9 [shape = 'u8[512]{0}', space=vmem, size = 0x400, scoped, tag = 'output window, operand 1, single buffered']
    #allocation10 [shape = 's32[1]{0}', space=sflag, size = 0x4, scoped, tag = 'scoped memory for tpu_custom_call.1']
    %13 = vsyncpa [#allocation4], 0
    %14 = vsyncpa [#allocation7], 0
    %15 = vsyncpa [#allocation5], 0
    %16 = vsyncpa [#allocation10], 0
    // Predicated region
    $region2: #{tpu_custom_call.1} parent=1 // pred_check
      _
    $region3: #{tpu_custom_call.1} parent=1 // pred_check_branch
      %18 = sbr.rel (0) target = $region5
    $region4: #{tpu_custom_call.1} parent=1 // pred_region
      %s20 = ssub.s32 128, 128
      %21 = vsyncadd [#allocation4], %s20
      %s22 = sshll.u32 [#allocation3], 4
      %s23 = int_to_ptr.vmem [resolvable:$true] %s22
      %28 = dma.hbm_to_vmem [thread:$0]  %s0, 128, %s23, [#allocation4], 64, 64, 4
    $region5: #{tpu_custom_call.1} parent=1 // pred_fallthru
      _
    // Predicated region
    $region6: #{tpu_custom_call.1} parent=1 // pred_check
      _
    $region7: #{tpu_custom_call.1} parent=1 // pred_check_branch
      %30 = sbr.rel (0) target = $region9
    $region8: #{tpu_custom_call.1} parent=1 // pred_region
      %s32 = ssub.s32 256, 256
      %33 = vsyncadd [#allocation7], %s32
      %s34 = sshll.u32 [#allocation6], 4
      %s35 = int_to_ptr.vmem [resolvable:$true] %s34
      %40 = dma.hbm_to_vmem [thread:$0]  %s1, 256, %s35, [#allocation7], 128, 128, 8
    $region9: #{tpu_custom_call.1} parent=1 // pred_fallthru
      _
    // Predicated region
    $region10: #{tpu_custom_call.1} parent=1 // pred_check
      _
    $region11: #{tpu_custom_call.1} parent=1 // pred_check_branch
      %42 = sbr.rel (0) target = $region13
    $region12: #{tpu_custom_call.1} parent=1 // pred_region
      _
    $region13: #{tpu_custom_call.1} parent=1 // pred_fallthru
      _
    // Predicated region
    $region14: #{tpu_custom_call.1} parent=1 // pred_check
      _
    $region15: #{tpu_custom_call.1} parent=1 // pred_check_branch
      %44 = sbr.rel (0) target = $region17
    $region16: #{tpu_custom_call.1} parent=1 // pred_region
      _
    $region17: #{tpu_custom_call.1} parent=1 // pred_fallthru
      _
    // Predicated region
    $region18: #{tpu_custom_call.1} parent=1 // pred_check
      _
    $region19: #{tpu_custom_call.1} parent=1 // pred_check_branch
      %46 = sbr.rel (0) target = $region21
    $region20: #{tpu_custom_call.1} parent=1 // pred_region
      _
    $region21: #{tpu_custom_call.1} parent=1 // pred_fallthru
      _
    // Predicated region
    $region22: #{tpu_custom_call.1} parent=1 // pred_check
      _
    $region23: #{tpu_custom_call.1} parent=1 // pred_check_branch
      %48 = sbr.rel (0) target = $region25
    $region24: #{tpu_custom_call.1} parent=1 // pred_region
      %49 = dma.done [#allocation4], 128
    $region25: #{tpu_custom_call.1} parent=1 // pred_fallthru
      _
    // Predicated region
    $region26: #{tpu_custom_call.1} parent=1 // pred_check
      _
    $region27: #{tpu_custom_call.1} parent=1 // pred_check_branch
      %51 = sbr.rel (0) target = $region29
    $region28: #{tpu_custom_call.1} parent=1 // pred_region
      %52 = dma.done [#allocation7], 256
    $region29: #{tpu_custom_call.1} parent=1 // pred_fallthru
      _
    %v54 = vld [vmem:[#allocation3] sm:$0xf]
    %v55 = vld [vmem:[#allocation3 + $0x4] sm:$0xf]
    %v56 = vld [vmem:[#allocation6] sm:$0xff]
    %v57 = vld [vmem:[#allocation6 + $0x8] sm:$0xff]
    %v58 = vld [vmem:[%s2] sm:$0x3]
    %v60 = vlaneseq
    %v61 = vshrl.u32 %v60, 7
    %v62 = vsub.s32 0, %v61
    %v63 = vrot.slane %v58, %v62
    %v64 = vlaneseq
    %v65 = vshrl.u32 %v64, 7
    %v66 = vsub.s32 1, %v65
    %v67 = vrot.slane %v58, %v66
    %v72 = vunpack.c.l.b16 %v54
    %v73 = vunpack.c.l.b16 %v55
    %v74 = vpack.c.b16 %v73, %v72
    %v77 = vunpack.c.l.b16 %v56
    %v78 = vunpack.c.h.b16 %v56
    %v79 = vunpack.c.l.b16 %v57
    %v80 = vunpack.c.h.b16 %v57
    %v81 = vpack.c.b16 %v79, %v77
    %v82 = vpack.c.b16 %v80, %v78
    %vm85 = vcmask 130048
    %v87 = vsel %vm85, %v74, 0
    %89 = vmatprep.subr.bf16.mxu0 %v82
    %90 = vmatpush1.bf16.msra.mxu0 %v81
    %91 = vmatprep.subr.bf16.mxu0 0
    %92 = vmatpush1.bf16.msra.mxu0 0
    %93 = vmatprep.subr.bf16.mxu0 0
    %94 = vmatpush1.bf16.msra.mxu0 0
    %95 = vmatprep.subr.bf16.mxu0 0
    %96 = vmatpush1.bf16.msra.mxu0 0
    %97 = vmatprep.subr.bf16.mxu0 0
    %98 = vmatpush1.bf16.msra.mxu0 0
    %99 = vmatprep.subr.bf16.mxu0 0
    %100 = vmatpush1.bf16.msra.mxu0 0
    %101 = vmatprep.subr.bf16.mxu0 0
    %102 = vmatpush1.bf16.msra.mxu0 0
    %103 = vmatprep.subr.bf16.mxu0 0
    %104 = vmatpush1.bf16.msra.mxu0 0
    %105 = vmatprep.subr.bf16.mxu0 0
    %106 = vmatpush1.bf16.msra.mxu0 0
    %107 = vmatprep.subr.bf16.mxu0 0
    %108 = vmatpush1.bf16.msra.mxu0 0
    %109 = vmatprep.subr.bf16.mxu0 0
    %110 = vmatpush1.bf16.msra.mxu0 0
    %111 = vmatprep.subr.bf16.mxu0 0
    %112 = vmatpush1.bf16.msra.mxu0 0
    %113 = vmatprep.subr.bf16.mxu0 0
    %114 = vmatpush1.bf16.msra.mxu0 0
    %115 = vmatprep.subr.bf16.mxu0 0
    %116 = vmatpush1.bf16.msra.mxu0 0
    %117 = vmatprep.subr.bf16.mxu0 0
    %118 = vmatpush1.bf16.msra.mxu0 0
    %119 = vmatprep.subr.bf16.mxu0 0
    %120 = vmatpush1.bf16.msra.mxu0 0
    %121 = vmatprep.mubr.bf16.mxu0 0
    %122 = vmatmul.mubr.bf16.gmra.mrb[0].mxu0 %v87
    %v123 = vpop.f32.mrb[0].mxu0
    %v124 = vadd.f32 %v63, %v123
    %v125 = vpop.f32.mrb[0].mxu0
    %v126 = vadd.f32 %v67, %v125
    %v127 = vpop.f32.mrb[0].mxu0
    %v128 = vadd.f32 %v63, %v127
    %v129 = vpop.f32.mrb[0].mxu0
    %v130 = vadd.f32 %v67, %v129
    %131 = vdwg.mxu0
    %v134 = vcombine.high %v124, %v124
    %v136 = vunpack.c.l.s4 1966171168
    %v137 = vunpack.c.0.s8 %v136
    %v138 = vlaneseq
    %v139 = vshrl.u32 %v138, 7
    %v140 = vsub.s32 %v137, %v139
    %v141 = vrot.slane %v124, %v140
    %v143 = vunpack.c.l.s4 1966171168
    %v144 = vunpack.c.0.s8 %v143
    %v145 = vlaneseq
    %v146 = vshrl.u32 %v145, 7
    %v147 = vsub.s32 %v144, %v146
    %v148 = vrot.slane %v134, %v147
    %v149 = vcombine.high %v141, %v141
    %v150 = vcombine.high %v148, %v148
    %v152 = vunpack.c.l.s4 1966171168
    %v153 = vunpack.c.0.s8 %v152
    %v154 = vlaneseq
    %v155 = vshrl.u32 %v154, 7
    %v156 = vsub.s32 %v153, %v155
    %v157 = vrot.slane %v141, %v156
    %v159 = vunpack.c.l.s4 1966171168
    %v160 = vunpack.c.0.s8 %v159
    %v161 = vlaneseq
    %v162 = vshrl.u32 %v161, 7
    %v163 = vsub.s32 %v160, %v162
    %v164 = vrot.slane %v148, %v163
    %v166 = vunpack.c.l.s4 1966171168
    %v167 = vunpack.c.0.s8 %v166
    %v168 = vlaneseq
    %v169 = vshrl.u32 %v168, 7
    %v170 = vsub.s32 %v167, %v169
    %v171 = vrot.slane %v149, %v170
    %v173 = vunpack.c.l.s4 1966171168
    %v174 = vunpack.c.0.s8 %v173
    %v175 = vlaneseq
    %v176 = vshrl.u32 %v175, 7
    %v177 = vsub.s32 %v174, %v176
    %v178 = vrot.slane %v150, %v177
    %v179 = vcombine.high %v157, %v157
    %v180 = vcombine.high %v164, %v164
    %v181 = vcombine.high %v171, %v171
    %v182 = vcombine.high %v178, %v178
    %v183 = vcombine.high %v128, %v128
    %v185 = vunpack.c.l.s4 1966171168
    %v186 = vunpack.c.0.s8 %v185
    %v187 = vlaneseq
    %v188 = vshrl.u32 %v187, 7
    %v189 = vsub.s32 %v186, %v188
    %v190 = vrot.slane %v128, %v189
    %v192 = vunpack.c.l.s4 1966171168
    %v193 = vunpack.c.0.s8 %v192
    %v194 = vlaneseq
    %v195 = vshrl.u32 %v194, 7
    %v196 = vsub.s32 %v193, %v195
    %v197 = vrot.slane %v183, %v196
    %v198 = vcombine.high %v190, %v190
    %v199 = vcombine.high %v197, %v197
    %v201 = vunpack.c.l.s4 1966171168
    %v202 = vunpack.c.0.s8 %v201
    %v203 = vlaneseq
    %v204 = vshrl.u32 %v203, 7
    %v205 = vsub.s32 %v202, %v204
    %v206 = vrot.slane %v190, %v205
    %v208 = vunpack.c.l.s4 1966171168
    %v209 = vunpack.c.0.s8 %v208
    %v210 = vlaneseq
    %v211 = vshrl.u32 %v210, 7
    %v212 = vsub.s32 %v209, %v211
    %v213 = vrot.slane %v197, %v212
    %v215 = vunpack.c.l.s4 1966171168
    %v216 = vunpack.c.0.s8 %v215
    %v217 = vlaneseq
    %v218 = vshrl.u32 %v217, 7
    %v219 = vsub.s32 %v216, %v218
    %v220 = vrot.slane %v198, %v219
    %v222 = vunpack.c.l.s4 1966171168
    %v223 = vunpack.c.0.s8 %v222
    %v224 = vlaneseq
    %v225 = vshrl.u32 %v224, 7
    %v226 = vsub.s32 %v223, %v225
    %v227 = vrot.slane %v199, %v226
    %v228 = vcombine.high %v206, %v206
    %v229 = vcombine.high %v213, %v213
    %v230 = vcombine.high %v220, %v220
    %v231 = vcombine.high %v227, %v227
    %v232 = vlaneseq
    %v233 = vshrl.u32 %v232, 7
    %v234 = vsub.s32 0, %v233
    %v235 = vrot.slane %v157, %v234
    %v236 = vlaneseq
    %v237 = vshrl.u32 %v236, 7
    %v238 = vsub.s32 0, %v237
    %v239 = vrot.slane %v171, %v238
    %v240 = vlaneseq
    %v241 = vshrl.u32 %v240, 7
    %v242 = vsub.s32 0, %v241
    %v243 = vrot.slane %v179, %v242
    %v244 = vlaneseq
    %v245 = vshrl.u32 %v244, 7
    %v246 = vsub.s32 0, %v245
    %v247 = vrot.slane %v181, %v246
    %v248 = vlaneseq
    %v249 = vshrl.u32 %v248, 7
    %v250 = vsub.s32 0, %v249
    %v251 = vrot.slane %v164, %v250
    %v252 = vlaneseq
    %v253 = vshrl.u32 %v252, 7
    %v254 = vsub.s32 0, %v253
    %v255 = vrot.slane %v178, %v254
    %v256 = vlaneseq
    %v257 = vshrl.u32 %v256, 7
    %v258 = vsub.s32 0, %v257
    %v259 = vrot.slane %v180, %v258
    %v260 = vlaneseq
    %v261 = vshrl.u32 %v260, 7
    %v262 = vsub.s32 0, %v261
    %v263 = vrot.slane %v182, %v262
    %v264 = vlaneseq
    %v265 = vshrl.u32 %v264, 7
    %v266 = vsub.s32 0, %v265
    %v267 = vrot.slane %v206, %v266
    %v268 = vlaneseq
    %v269 = vshrl.u32 %v268, 7
    %v270 = vsub.s32 0, %v269
    %v271 = vrot.slane %v220, %v270
    %v272 = vlaneseq
    %v273 = vshrl.u32 %v272, 7
    %v274 = vsub.s32 0, %v273
    %v275 = vrot.slane %v228, %v274
    %v276 = vlaneseq
    %v277 = vshrl.u32 %v276, 7
    %v278 = vsub.s32 0, %v277
    %v279 = vrot.slane %v230, %v278
    %v280 = vlaneseq
    %v281 = vshrl.u32 %v280, 7
    %v282 = vsub.s32 0, %v281
    %v283 = vrot.slane %v213, %v282
    %v284 = vlaneseq
    %v285 = vshrl.u32 %v284, 7
    %v286 = vsub.s32 0, %v285
    %v287 = vrot.slane %v227, %v286
    %v288 = vlaneseq
    %v289 = vshrl.u32 %v288, 7
    %v290 = vsub.s32 0, %v289
    %v291 = vrot.slane %v229, %v290
    %v292 = vlaneseq
    %v293 = vshrl.u32 %v292, 7
    %v294 = vsub.s32 0, %v293
    %v295 = vrot.slane %v231, %v294
    %v312 = vadd.f32 %v235, %v126
    %v313 = vadd.f32 %v239, %v126
    %v314 = vadd.f32 %v243, %v126
    %v315 = vadd.f32 %v247, %v126
    %v316 = vadd.f32 %v251, %v126
    %v317 = vadd.f32 %v255, %v126
    %v318 = vadd.f32 %v259, %v126
    %v319 = vadd.f32 %v263, %v126
    %v320 = vadd.f32 %v267, %v130
    %v321 = vadd.f32 %v271, %v130
    %v322 = vadd.f32 %v275, %v130
    %v323 = vadd.f32 %v279, %v130
    %v324 = vadd.f32 %v283, %v130
    %v325 = vadd.f32 %v287, %v130
    %v326 = vadd.f32 %v291, %v130
    %v327 = vadd.f32 %v295, %v130
    %v328 = vmax.f32 %v312, 0.0
    %v329 = vmax.f32 %v313, 0.0
    %v330 = vmax.f32 %v314, 0.0
    %v331 = vmax.f32 %v315, 0.0
    %v332 = vmax.f32 %v316, 0.0
    %v333 = vmax.f32 %v317, 0.0
    %v334 = vmax.f32 %v318, 0.0
    %v335 = vmax.f32 %v319, 0.0
    %v336 = vmax.f32 %v320, 0.0
    %v337 = vmax.f32 %v321, 0.0
    %v338 = vmax.f32 %v322, 0.0
    %v339 = vmax.f32 %v323, 0.0
    %v340 = vmax.f32 %v324, 0.0
    %v341 = vmax.f32 %v325, 0.0
    %v342 = vmax.f32 %v326, 0.0
    %v343 = vmax.f32 %v327, 0.0
    %v344 = vld [vmem:[%s3] sm:$0x1]
    %s345 = sld [smem:[#allocation2]]
    %v346 = vstv %s345
    %347 = vmatprep.subr.mxu0 0.0
    %348 = vmatpush1.xpose.msra.mxu0 %v328
    %349 = vmatprep.subr.mxu0 0.0
    %350 = vmatpush1.xpose.msra.mxu0 %v329
    %351 = vmatprep.subr.mxu0 0.0
    %352 = vmatpush1.xpose.msra.mxu0 %v330
    %353 = vmatprep.subr.mxu0 0.0
    %354 = vmatpush1.xpose.msra.mxu0 %v331
    %355 = vmatprep.subr.mxu0 0.0
    %356 = vmatpush1.xpose.msra.mxu0 %v332
    %357 = vmatprep.subr.mxu0 0.0
    %358 = vmatpush1.xpose.msra.mxu0 %v333
    %359 = vmatprep.subr.mxu0 0.0
    %360 = vmatpush1.xpose.msra.mxu0 %v334
    %361 = vmatprep.subr.mxu0 0.0
    %362 = vmatpush1.xpose.msra.mxu0 %v335
    %363 = vmatprep.subr.mxu0 0.0
    %364 = vmatpush1.xpose.msra.mxu0 %v336
    %365 = vmatprep.subr.mxu0 0.0
    %366 = vmatpush1.xpose.msra.mxu0 %v337
    %367 = vmatprep.subr.mxu0 0.0
    %368 = vmatpush1.xpose.msra.mxu0 %v338
    %369 = vmatprep.subr.mxu0 0.0
    %370 = vmatpush1.xpose.msra.mxu0 %v339
    %371 = vmatprep.subr.mxu0 0.0
    %372 = vmatpush1.xpose.msra.mxu0 %v340
    %373 = vmatprep.subr.mxu0 0.0
    %374 = vmatpush1.xpose.msra.mxu0 %v341
    %375 = vmatprep.subr.mxu0 0.0
    %376 = vmatpush1.xpose.msra.mxu0 %v342
    %377 = vmatprep.subr.mxu0 0.0
    %378 = vmatpush1.xpose.msra.mxu0 %v343
    %379 = vmatprep.subr.mxu0 0.0
    %380 = vmatpush1.xpose.msra.mxu0 0.0
    %381 = vmatprep.subr.mxu0 0.0
    %382 = vmatpush1.xpose.msra.mxu0 0.0
    %383 = vmatprep.subr.mxu0 0.0
    %384 = vmatpush1.xpose.msra.mxu0 0.0
    %385 = vmatprep.subr.mxu0 0.0
    %386 = vmatpush1.xpose.msra.mxu0 0.0
    %387 = vmatprep.subr.mxu0 0.0
    %388 = vmatpush1.xpose.msra.mxu0 0.0
    %389 = vmatprep.subr.mxu0 0.0
    %390 = vmatpush1.xpose.msra.mxu0 0.0
    %391 = vmatprep.subr.mxu0 0.0
    %392 = vmatpush1.xpose.msra.mxu0 0.0
    %393 = vmatprep.subr.mxu0 0.0
    %394 = vmatpush1.xpose.msra.mxu0 0.0
    %395 = vmatprep.subr.mxu0 0.0
    %396 = vmatpush1.xpose.msra.mxu0 0.0
    %397 = vmatprep.subr.mxu0 0.0
    %398 = vmatpush1.xpose.msra.mxu0 0.0
    %399 = vmatprep.subr.mxu0 0.0
    %400 = vmatpush1.xpose.msra.mxu0 0.0
    %401 = vmatprep.subr.mxu0 0.0
    %402 = vmatpush1.xpose.msra.mxu0 0.0
    %403 = vmatprep.subr.mxu0 0.0
    %404 = vmatpush1.xpose.msra.mxu0 0.0
    %405 = vmatprep.subr.mxu0 0.0
    %406 = vmatpush1.xpose.msra.mxu0 0.0
    %407 = vmatprep.subr.mxu0 0.0
    %408 = vmatpush1.xpose.msra.mxu0 0.0
    %409 = vmatprep.subr.mxu0 0.0
    %410 = vmatpush1.xpose.msra.mxu0 0.0
    %411 = vmatprep.mubr.f32.mxu0 0.0
    %412 = vmatmul.mubr.f32.gmra.mrb[0].mxu0 %v344
    %v413 = vpop.f32.mrb[0].mxu0
    %v414 = vadd.f32 %v346, %v413
    %v415 = vpop.f32.mrb[0].mxu0
    %416 = vdwg.mxu0
    %v417 = vxor.u32 %v414, 2147483648
    %v418 = vmul.f32 %v417, 1.442695
    %v419 = vpow.pop %v418
    %v420 = vadd.f32 %v419, 1.0
    %v421 = vrcp.pop %v420
    %v422 = vmul.f32 1.0, %v421
    %423 = vst [vmem:[#allocation8] sm:$0x1] %v422
    %v424 = vand.u32 2147483647, %v422
    %vm425 = vcmask 1040384
    %v426 = vsel %vm425, %v424, 0.0
    %427 = vadd.xlane.f32.xlu0 %v426
    %v428 = vpop.xlane.xlu0 %427
    %v429 = vrot.slane %v428, 4
    %v430 = vadd.f32 %v428, %v429
    %v431 = vrot.slane %v430, 2
    %v432 = vadd.f32 %v430, %v431
    %v433 = vrot.slane %v432, 1
    %v434 = vadd.f32 %v432, %v433
    %s435 = vtos %v434
    %v436 = vstv %s435
    %vm437 = vcmask 0
    %438 = vst.msk [vmem:[#allocation9] sm:$0x1] %vm437, %v436
    // Predicated region
    $region30: #{tpu_custom_call.1} parent=1 // pred_check
      _
    $region31: #{tpu_custom_call.1} parent=1 // pred_check_branch
      %440 = sbr.rel (0) target = $region33
    $region32: #{tpu_custom_call.1} parent=1 // pred_region
      %s442 = ssub.s32 16, 16
      %443 = vsyncadd [#allocation5], %s442
      %s445 = sshll.u32 [#allocation8], 4
      %s446 = int_to_ptr.vmem [resolvable:$true] %s445
      %448 = dma.vmem_to_hbm [thread:$0]  %s446, 16, %s5, [#allocation5]
    $region33: #{tpu_custom_call.1} parent=1 // pred_fallthru
      _
    // Predicated region
    $region34: #{tpu_custom_call.1} parent=1 // pred_check
      _
    $region35: #{tpu_custom_call.1} parent=1 // pred_check_branch
      %450 = sbr.rel (0) target = $region37
    $region36: #{tpu_custom_call.1} parent=1 // pred_region
      %s452 = ssub.s32 16, 16
      %453 = vsyncadd [#allocation10], %s452
      %s455 = sshll.u32 [#allocation9], 4
      %s456 = int_to_ptr.vmem [resolvable:$true] %s455
      %458 = dma.vmem_to_hbm [thread:$0]  %s456, 16, %s6, [#allocation10]
    $region37: #{tpu_custom_call.1} parent=1 // pred_fallthru
      _
    // Predicated region
    $region38: #{tpu_custom_call.1} parent=1 // pred_check
      _
    $region39: #{tpu_custom_call.1} parent=1 // pred_check_branch
      %460 = sbr.rel (0) target = $region41
    $region40: #{tpu_custom_call.1} parent=1 // pred_region
      %461 = dma.done [#allocation5], 16
    $region41: #{tpu_custom_call.1} parent=1 // pred_fallthru
      _
    // Predicated region
    $region42: #{tpu_custom_call.1} parent=1 // pred_check
      _
    $region43: #{tpu_custom_call.1} parent=1 // pred_check_branch
      %463 = sbr.rel (0) target = $region45
    $region44: #{tpu_custom_call.1} parent=1 // pred_region
      %464 = dma.done [#allocation10], 16
    $region45: #{tpu_custom_call.1} parent=1 // pred_fallthru
      _
    %465 = vsyncpa [#allocation4], 1
    %466 = vsyncpa [#allocation7], 1
    %467 = vsyncpa [#allocation5], 1
    %468 = vsyncpa [#allocation10], 1

</llo_original>
